<compile_context>
chip_gen: v5e
topology: v5e:2x2
jax: 0.10.0
libtpu: 0.0.40
codegen_flags: <defaults>
</compile_context>

<pallas_src>
import jax
import jax.numpy as jnp
from jax.experimental import pallas as pl
from jax.experimental.pallas import tpu as pltpu


def _round_up(x, m):
    return ((x + m - 1) // m) * m


def mlp_kernel(x_ref, w1_ref, b1_ref, w2_ref, b2_ref, o_ref):
    # fc1: (TM, C) @ (C, Hp) — bf16 operands, f32 accumulation on the MXU.
    h = jnp.dot(x_ref[...], w1_ref[...], preferred_element_type=jnp.float32)
    # Bias + ReLU in f32 on the VPU (safe on v5e, which has no bf16 VALU).
    h = jnp.maximum(h + b1_ref[...].astype(jnp.float32), 0.0)
    # Dropout(p=0) -> identity.
    # Cast back to the fc2 weight dtype so matmul-2 is a native bf16 MXU pass.
    if w2_ref.dtype != jnp.float32:
        h = h.astype(w2_ref.dtype)
    # fc2: (TM, Hp) @ (Hp, O) + (1, O), f32 accumulation.
    y = jnp.dot(h, w2_ref[...], preferred_element_type=jnp.float32)
    y = y + b2_ref[...].astype(jnp.float32)
    o_ref[...] = y.astype(o_ref.dtype)


def mlp_pallas(x, w1, b1, w2, b2, *, tile_m=1024, min_grid=2,
               io_dtype=jnp.bfloat16, out_dtype=None):
    """x: (B, N, C). w1: (C, H), b1: (H,), w2: (H, O), b2: (O,).

    Returns (B, N, O) in `out_dtype` (defaults to `io_dtype`).
    Matmuls accumulate in f32; x / weights / output are streamed in `io_dtype`.
    """
    B, N, C = x.shape
    H = w1.shape[1]
    O = w2.shape[1]
    M = B * N
    if out_dtype is None:
        out_dtype = io_dtype

    # bf16 streaming of the activations (halves x / out HBM bytes).
    x2d = x.reshape(M, C).astype(io_dtype)

    # Zero-pad the hidden dim to a multiple of 128 lanes for lane-dense
    # intermediates; weights cast once to io_dtype (bf16) — they stay
    # whole-array, single-copy VMEM residents below.
    Hp = _round_up(H, 128)
    w1p = jnp.zeros((C, Hp), io_dtype).at[:, :H].set(w1.astype(io_dtype))
    b1p = jnp.zeros((1, Hp), jnp.float32).at[:, :H].set(b1.astype(jnp.float32))
    w2p = jnp.zeros((Hp, O), io_dtype).at[:H, :].set(w2.astype(io_dtype))
    b2p = b2.reshape(1, O).astype(jnp.float32)

    # M tiling: big tiles amortize the ~0.35 us per-grid-step overhead; at
    # least `min_grid` tiles so both v7x TensorCores get work.  Multiple of 8
    # keeps sublane alignment.
    tm = max(8, min(tile_m, _round_up(pl.cdiv(M, min_grid), 8)))
    m_pad = _round_up(M, tm)
    if m_pad != M:
        # Zero-pad ragged M; padded rows are sliced off below (no OOB access,
        # kernel stays branch-free).
        x2d = jnp.pad(x2d, ((0, m_pad - M), (0, 0)))
    grid = (m_pad // tm,)

    # Weights / biases: whole-array, single-copy VMEM residents (their block
    # index never changes across the M grid, so double-buffering them would
    # only waste VMEM and DMA).
    resident = pl.BlockSpec(memory_space=pltpu.MemorySpace.VMEM)

    out2d = pl.pallas_call(
        mlp_kernel,
        out_shape=jax.ShapeDtypeStruct((m_pad, O), out_dtype),
        grid_spec=pl.GridSpec(
            grid=grid,
            in_specs=[
                pl.BlockSpec((tm, C), lambda i: (i, 0)),  # X, pipelined over M
                resident,                                  # w1 (C, Hp)
                resident,                                  # b1 (1, Hp)
                resident,                                  # w2 (Hp, O)
                resident,                                  # b2 (1, O)
            ],
            # O=288 -> one masked vst per 3 output vregs; left unpadded on
            # purpose (padding would add 33% HBM write bytes).
            out_specs=pl.BlockSpec((tm, O), lambda i: (i, 0)),
        ),
        compiler_params=pltpu.CompilerParams(
            dimension_semantics=("parallel",),   # megacore-shard M tiles (v7x)
            vmem_limit_bytes=32 * 1024 * 1024,   # fits v5e/v6e/v7x budgets
        ),
    )(x2d, w1p, b1p, w2p, b2p)

    if m_pad != M:
        out2d = out2d[:M]
    return out2d.reshape(B, N, O)


if __name__ == "__main__":
    # Shapes consistent with ESRT's MLABlock: n_feats=32 -> 3x3 patches ->
    # dim = 288, hidden = dim // 4 = 72, N = H*W tokens (9x9 here), batch = 2.
    B = 2
    Hs = Ws = 9
    N = Hs * Ws                       # 81 tokens -> M = 162 (ragged, not /8)
    in_features = 288
    hidden_features = in_features // 4   # 72  (padded to 128 inside wrapper)
    out_features = in_features           # 288

    key = jax.random.PRNGKey(0)
    kx, kw1, kb1, kw2, kb2 = jax.random.split(key, 5)

    x = jax.random.normal(kx, (B, N, in_features), dtype=jnp.float32)

    # Deterministic parameter init (uniform, PyTorch-Linear-like bounds).
    bound1 = 1.0 / (in_features ** 0.5)
    w1 = jax.random.uniform(kw1, (in_features, hidden_features),
                            minval=-bound1, maxval=bound1, dtype=jnp.float32)
    b1 = jax.random.uniform(kb1, (hidden_features,),
                            minval=-bound1, maxval=bound1, dtype=jnp.float32)
    bound2 = 1.0 / (hidden_features ** 0.5)
    w2 = jax.random.uniform(kw2, (hidden_features, out_features),
                            minval=-bound2, maxval=bound2, dtype=jnp.float32)
    b2 = jax.random.uniform(kb2, (out_features,),
                            minval=-bound2, maxval=bound2, dtype=jnp.float32)

    # Default tile_m / min_grid: M=162 -> 2 tiles of 88 rows (exercises the
    # multi-tile pipeline, the ragged-M padding path, and the H 72->128 pad).
    out = mlp_pallas(x, w1, b1, w2, b2)
    out = jax.block_until_ready(out)
    assert out.shape == (B, N, out_features)
    out_f32 = out.astype(jnp.float32)

    # Reference 1: same-precision (bf16 operands, f32 accumulation) — tight.
    x_bf = x.astype(jnp.bfloat16)
    w1_bf = w1.astype(jnp.bfloat16)
    w2_bf = w2.astype(jnp.bfloat16)
    h_ref = jnp.maximum(
        jnp.dot(x_bf, w1_bf, preferred_element_type=jnp.float32) + b1, 0.0)
    ref_bf = (jnp.dot(h_ref.astype(jnp.bfloat16), w2_bf,
                      preferred_element_type=jnp.float32) + b2)
    ref_bf = ref_bf.astype(jnp.bfloat16).astype(jnp.float32)
    assert jnp.allclose(out_f32, ref_bf, atol=1e-2, rtol=1e-2), (
        float(jnp.max(jnp.abs(out_f32 - ref_bf))))

    # Reference 2: full-f32 math — loose (documents the bf16-streaming
    # precision trade-off requested by the perf review).
    ref_f32 = jnp.maximum(x @ w1 + b1, 0.0) @ w2 + b2
    assert jnp.allclose(out_f32, ref_f32, atol=7e-2, rtol=7e-2), (
        float(jnp.max(jnp.abs(out_f32 - ref_f32))))

    print("KERNEL_OK")
</pallas_src>

<mosaic_0001>
module attributes {stable_mosaic.version = 11 : i64} {
  func.func @mlp_kernel(%arg0: i32, %arg1: memref<88x288xbf16, #tpu.memory_space<vmem>>, %arg2: memref<288x128xbf16, #tpu.memory_space<vmem>>, %arg3: memref<1x128xf32, #tpu.memory_space<vmem>>, %arg4: memref<128x288xbf16, #tpu.memory_space<vmem>>, %arg5: memref<1x288xf32, #tpu.memory_space<vmem>>, %arg6: memref<88x288xbf16, #tpu.memory_space<vmem>>) attributes {dimension_semantics = [#tpu.dimension_semantics<parallel>], iteration_bounds = array<i64: 2>, scalar_prefetch = 0 : i64, scratch_operands = 0 : i64, tpu.core_type = #tpu.core_type<tc>, window_params = [{transform_indices = @transform_0, window_bounds = array<i64: 88, 288>}, {pipeline_mode = #tpu.pipeline_mode<synchronous>, transform_indices = @transform_1, window_bounds = array<i64: 288, 128>}, {pipeline_mode = #tpu.pipeline_mode<synchronous>, transform_indices = @transform_2, window_bounds = array<i64: 1, 128>}, {pipeline_mode = #tpu.pipeline_mode<synchronous>, transform_indices = @transform_3, window_bounds = array<i64: 128, 288>}, {pipeline_mode = #tpu.pipeline_mode<synchronous>, transform_indices = @transform_4, window_bounds = array<i64: 1, 288>}, {transform_indices = @transform_5, window_bounds = array<i64: 88, 288>}]} {
    %c0 = arith.constant 0 : index
    %c0_0 = arith.constant 0 : index
    %0 = vector.load %arg1[%c0, %c0_0] : memref<88x288xbf16, #tpu.memory_space<vmem>>, vector<88x288xbf16>
    %c0_1 = arith.constant 0 : index
    %c0_2 = arith.constant 0 : index
    %1 = vector.load %arg2[%c0_1, %c0_2] : memref<288x128xbf16, #tpu.memory_space<vmem>>, vector<288x128xbf16>
    %cst = arith.constant dense<0.000000e+00> : vector<88x128xf32>
    %2 = tpu.matmul %0, %1, %cst {dimension_numbers = #tpu.dot_dimension_numbers<[1], [0], [0], [1], [0, 0, 1, 1], [], []>} : vector<88x288xbf16>, vector<288x128xbf16>, vector<88x128xf32> -> vector<88x128xf32>
    %c0_3 = arith.constant 0 : index
    %c0_4 = arith.constant 0 : index
    %3 = vector.load %arg3[%c0_3, %c0_4] : memref<1x128xf32, #tpu.memory_space<vmem>>, vector<1x128xf32>
    %4 = vector.broadcast %3 : vector<1x128xf32> to vector<88x128xf32>
    %5 = arith.addf %2, %4 : vector<88x128xf32>
    %cst_5 = arith.constant 0.000000e+00 : f32
    %6 = vector.broadcast %cst_5 : f32 to vector<88x128xf32>
    %7 = arith.maximumf %5, %6 : vector<88x128xf32>
    %8 = arith.truncf %7 : vector<88x128xf32> to vector<88x128xbf16>
    %c0_6 = arith.constant 0 : index
    %c0_7 = arith.constant 0 : index
    %9 = vector.load %arg4[%c0_6, %c0_7] : memref<128x288xbf16, #tpu.memory_space<vmem>>, vector<128x288xbf16>
    %cst_8 = arith.constant dense<0.000000e+00> : vector<88x288xf32>
    %10 = tpu.matmul %8, %9, %cst_8 {dimension_numbers = #tpu.dot_dimension_numbers<[1], [0], [0], [1], [0, 0, 1, 1], [], []>} : vector<88x128xbf16>, vector<128x288xbf16>, vector<88x288xf32> -> vector<88x288xf32>
    %c0_9 = arith.constant 0 : index
    %c0_10 = arith.constant 0 : index
    %11 = vector.load %arg5[%c0_9, %c0_10] : memref<1x288xf32, #tpu.memory_space<vmem>>, vector<1x288xf32>
    %12 = vector.broadcast %11 : vector<1x288xf32> to vector<88x288xf32>
    %13 = arith.addf %10, %12 : vector<88x288xf32>
    %14 = arith.truncf %13 : vector<88x288xf32> to vector<88x288xbf16>
    %c0_11 = arith.constant 0 : index
    %c0_12 = arith.constant 0 : index
    %15 = vector.load %arg6[%c0_11, %c0_12] : memref<88x288xbf16, #tpu.memory_space<vmem>>, vector<88x288xbf16>
    tpu.vector_store %arg6[%c0_11, %c0_12], %14 {strides = array<i32>} : memref<88x288xbf16, #tpu.memory_space<vmem>>, vector<88x288xbf16>,
    return
  }
  func.func @transform_0(%arg0: i32) -> (i32, i32) {
    %c0_i32 = arith.constant 0 : i32
    %c0_i32_0 = arith.constant 0 : i32
    return %arg0, %c0_i32 : i32, i32
  }
  func.func @transform_1(%arg0: i32) -> (i32, i32) {
    %c0_i32 = arith.constant 0 : i32
    %c0_i32_0 = arith.constant 0 : i32
    %c0_i32_1 = arith.constant 0 : i32
    return %c0_i32, %c0_i32_0 : i32, i32
  }
  func.func @transform_2(%arg0: i32) -> (i32, i32) {
    %c0_i32 = arith.constant 0 : i32
    %c0_i32_0 = arith.constant 0 : i32
    %c0_i32_1 = arith.constant 0 : i32
    return %c0_i32, %c0_i32_0 : i32, i32
  }
  func.func @transform_3(%arg0: i32) -> (i32, i32) {
    %c0_i32 = arith.constant 0 : i32
    %c0_i32_0 = arith.constant 0 : i32
    %c0_i32_1 = arith.constant 0 : i32
    return %c0_i32, %c0_i32_0 : i32, i32
  }
  func.func @transform_4(%arg0: i32) -> (i32, i32) {
    %c0_i32 = arith.constant 0 : i32
    %c0_i32_0 = arith.constant 0 : i32
    %c0_i32_1 = arith.constant 0 : i32
    return %c0_i32, %c0_i32_0 : i32, i32
  }
  func.func @transform_5(%arg0: i32) -> (i32, i32) {
    %c0_i32 = arith.constant 0 : i32
    %c0_i32_0 = arith.constant 0 : i32
    return %arg0, %c0_i32 : i32, i32
  }
}

</mosaic_0001>

<llo_original>
// kernel: tpu_custom_call.1
$region0: #{tpu_custom_call.1}
  #allocation0 [shape = 'u32[]', space=smem, size = 0x4, offset = 0x4, fixed_abs, tag = 'smem constant byte address 0x4 - core index']
  #allocation1 [shape = 'u32[72,128]{1,0:T(1,128)}', space=vmem, size = 0x9000, scoped, tag = 'internal scratch']
  %s0 = inlined_call_operand.vmem [shape: bf16[176,288], index: 0, kind: input, shape index: {}]
  %s1 = inlined_call_operand.hbm [shape: bf16[288,128], index: 1, kind: input, shape index: {}]
  %s2 = inlined_call_operand.vmem [shape: f32[1,128], index: 2, kind: input, shape index: {}]
  %s3 = inlined_call_operand.vmem [shape: bf16[128,288], index: 3, kind: input, shape index: {}]
  %s4 = inlined_call_operand.vmem [shape: f32[1,288], index: 4, kind: input, shape index: {}]
  %s5 = inlined_call_operand.hbm [shape: bf16[176,288], index: 5, kind: output, shape index: {}]
  %s6 = sld [smem:[#allocation0]]
  $region57: #{tpu_custom_call.1} parent=0
    _
  %s8 = ssub.s32 1, %s6
  %s9 = scalar_select 0, %s8, %s6
  $region1: #{tpu_custom_call.1} parent=0
    #allocation2 [shape = 'u8[73728]{0}', space=vmem, size = 0x12000, scoped, tag = 'input window, operand 1, single buffered']
    #allocation3 [shape = 's32[2]{0}', space=sflag, size = 0x8, scoped, tag = 'scoped memory for tpu_custom_call.1']
    #allocation4 [shape = 's32[2]{0}', space=sflag, size = 0x8, scoped, tag = 'scoped memory for tpu_custom_call.1']
    #allocation5 [shape = 'u8[135168]{0}', space=vmem, size = 0x21000, scoped, tag = 'output window, operand 0']
    %10 = vsyncpa [#allocation3], 0
    %11 = vsyncpa [#allocation4], 0
    %s12 = scalar_lea.sflag [#allocation4], 1
    %13 = vsyncpa %s12, 0
    loop: start=0, step=1, limit=4
    $region2: #{tpu_custom_call.1} parent=1 // loop_pre_header
      _
    $region3: #{tpu_custom_call.1} parent=1 // loop_header
      %s15 = sphi 0, %s19
      %p16 = scmp.ge.s32.totalorder %s15, 4
      %s25 = sphi 0, %s27
      %s28 = sphi 0, %s25
      %s29 = sphi 0, %s28
      %s45 = sphi 0, %s29
      %s49 = sphi 0, %s49
      %s51 = sphi 0, %s49
      %s52 = sphi 0, %s51
      %s66 = sphi 0, %s52
      %s70 = sphi 0, %s70
      %s72 = sphi 0, %s70
      %s73 = sphi 0, %s72
      %s87 = sphi 0, %s73
      %s91 = sphi 0, %s91
      %s93 = sphi 0, %s91
      %s94 = sphi 0, %s93
      %s108 = sphi 0, %s94
      %s112 = sphi 0, %s112
      %s114 = sphi 0, %s112
      %s115 = sphi 0, %s114
      %s129 = sphi 0, %s115
      %s135 = sphi 0, %s137
      %s138 = sphi 0, %s135
      %s139 = sphi 0, %s138
      %s155 = sphi 0, %s139
    $region4: #{tpu_custom_call.1} parent=1 // loop_header_branch
      %18 = sbr.rel (%p16) target = $region8
    $region5: #{tpu_custom_call.1} parent=1 // loop_body
      %s20 = ssub.s32 %s15, 1
      %s21 = ssub.s32 %s15, 2
      %s22 = sadd.s32 %s15, 1
      %s23 = ssub.s32 %s15, %s22
      %p24 = scmp.eq.s32.totalorder %s23, 0
      %s26 = sadd.s32 %s25, 1
      %s27 = scalar_select %p24, %s25, %s26
      %p30 = pneg %p24
      %p31 = scmp.eq.s32.totalorder %s15, 1
      %p32 = por %p30, %p31
      %p33 = scmp.ne.s32.totalorder %s25, %s28
      %p34 = scmp.eq.s32.totalorder %s15, 0
      %p35 = por %p33, %p34
      %p36 = scmp.ne.s32.totalorder %s25, %s28
      %p37 = scmp.eq.s32.totalorder %s20, 1
      %p38 = por %p36, %p37
      %p39 = scmp.ne.s32.totalorder %s28, %s29
      %p40 = scmp.eq.s32.totalorder %s20, 0
      %p41 = por %p39, %p40
      %p42 = scmp.ne.s32.totalorder %s28, %s29
      %p43 = scmp.eq.s32.totalorder %s21, 1
      %p44 = por %p42, %p43
      %p46 = scmp.ne.s32.totalorder %s29, %s45
      %p47 = scmp.eq.s32.totalorder %s21, 0
      %p48 = por %p46, %p47
      %s50 = sadd.s32 %s49, 1
      %p53 = scmp.eq.s32.totalorder %s15, 1
      %p54 = scmp.ne.s32.totalorder %s49, %s51
      %p55 = scmp.eq.s32.totalorder %s15, 0
      %p56 = por %p54, %p55
      %p57 = scmp.ne.s32.totalorder %s49, %s51
      %p58 = scmp.eq.s32.totalorder %s20, 1
      %p59 = por %p57, %p58
      %p60 = scmp.ne.s32.totalorder %s51, %s52
      %p61 = scmp.eq.s32.totalorder %s20, 0
      %p62 = por %p60, %p61
      %p63 = scmp.ne.s32.totalorder %s51, %s52
      %p64 = scmp.eq.s32.totalorder %s21, 1
      %p65 = por %p63, %p64
      %p67 = scmp.ne.s32.totalorder %s52, %s66
      %p68 = scmp.eq.s32.totalorder %s21, 0
      %p69 = por %p67, %p68
      %s71 = sadd.s32 %s70, 1
      %p74 = scmp.eq.s32.totalorder %s15, 1
      %p75 = scmp.ne.s32.totalorder %s70, %s72
      %p76 = scmp.eq.s32.totalorder %s15, 0
      %p77 = por %p75, %p76
      %p78 = scmp.ne.s32.totalorder %s70, %s72
      %p79 = scmp.eq.s32.totalorder %s20, 1
      %p80 = por %p78, %p79
      %p81 = scmp.ne.s32.totalorder %s72, %s73
      %p82 = scmp.eq.s32.totalorder %s20, 0
      %p83 = por %p81, %p82
      %p84 = scmp.ne.s32.totalorder %s72, %s73
      %p85 = scmp.eq.s32.totalorder %s21, 1
      %p86 = por %p84, %p85
      %p88 = scmp.ne.s32.totalorder %s73, %s87
      %p89 = scmp.eq.s32.totalorder %s21, 0
      %p90 = por %p88, %p89
      %s92 = sadd.s32 %s91, 1
      %p95 = scmp.eq.s32.totalorder %s15, 1
      %p96 = scmp.ne.s32.totalorder %s91, %s93
      %p97 = scmp.eq.s32.totalorder %s15, 0
      %p98 = por %p96, %p97
      %p99 = scmp.ne.s32.totalorder %s91, %s93
      %p100 = scmp.eq.s32.totalorder %s20, 1
      %p101 = por %p99, %p100
      %p102 = scmp.ne.s32.totalorder %s93, %s94
      %p103 = scmp.eq.s32.totalorder %s20, 0
      %p104 = por %p102, %p103
      %p105 = scmp.ne.s32.totalorder %s93, %s94
      %p106 = scmp.eq.s32.totalorder %s21, 1
      %p107 = por %p105, %p106
      %p109 = scmp.ne.s32.totalorder %s94, %s108
      %p110 = scmp.eq.s32.totalorder %s21, 0
      %p111 = por %p109, %p110
      %s113 = sadd.s32 %s112, 1
      %p116 = scmp.eq.s32.totalorder %s15, 1
      %p117 = scmp.ne.s32.totalorder %s112, %s114
      %p118 = scmp.eq.s32.totalorder %s15, 0
      %p119 = por %p117, %p118
      %p120 = scmp.ne.s32.totalorder %s112, %s114
      %p121 = scmp.eq.s32.totalorder %s20, 1
      %p122 = por %p120, %p121
      %p123 = scmp.ne.s32.totalorder %s114, %s115
      %p124 = scmp.eq.s32.totalorder %s20, 0
      %p125 = por %p123, %p124
      %p126 = scmp.ne.s32.totalorder %s114, %s115
      %p127 = scmp.eq.s32.totalorder %s21, 1
      %p128 = por %p126, %p127
      %p130 = scmp.ne.s32.totalorder %s115, %s129
      %p131 = scmp.eq.s32.totalorder %s21, 0
      %p132 = por %p130, %p131
      %s133 = ssub.s32 %s15, %s22
      %p134 = scmp.eq.s32.totalorder %s133, 0
      %s136 = sadd.s32 %s135, 1
      %s137 = scalar_select %p134, %s135, %s136
      %p140 = pneg %p134
      %p141 = scmp.eq.s32.totalorder %s15, 1
      %p142 = por %p140, %p141
      %p143 = scmp.ne.s32.totalorder %s135, %s138
      %p144 = scmp.eq.s32.totalorder %s15, 0
      %p145 = por %p143, %p144
      %p146 = scmp.ne.s32.totalorder %s135, %s138
      %p147 = scmp.eq.s32.totalorder %s20, 1
      %p148 = por %p146, %p147
      %p149 = scmp.ne.s32.totalorder %s138, %s139
      %p150 = scmp.eq.s32.totalorder %s20, 0
      %p151 = por %p149, %p150
      %p152 = scmp.ne.s32.totalorder %s138, %s139
      %p153 = scmp.eq.s32.totalorder %s21, 1
      %p154 = por %p152, %p153
      %p156 = scmp.ne.s32.totalorder %s139, %s155
      %p157 = scmp.eq.s32.totalorder %s21, 0
      %p158 = por %p156, %p157
      %p159 = scmp.le.s32.totalorder 1, %s15
      %p160 = scmp.lt.s32.totalorder %s15, 3
      %p161 = pnand %p159, %p160
      %p162 = pneg %p161
      // Predicated region
      $region9: #{tpu_custom_call.1} parent=5 // pred_check
        _
      $region10: #{tpu_custom_call.1} parent=5 // pred_check_branch
        %164 = sbr.rel (%p161) target = $region12
      $region11: #{tpu_custom_call.1} parent=5 // pred_region
        %s165 = ssub.s32 %s15, 1
        // Predicated region
        $region13: #{tpu_custom_call.1} parent=11 // pred_check
          %p166 = pneg %p62
        $region14: #{tpu_custom_call.1} parent=11 // pred_check_branch
          %168 = sbr.rel (%p166) target = $region16
        $region15: #{tpu_custom_call.1} parent=11 // pred_region
          %170 = vsyncadd [#allocation3], 0
          %s171 = sshll.u32 %s1, 4
          %s172 = int_to_ptr.hbm [resolvable:$true] %s171
          %s173 = sshll.u32 [#allocation2], 4
          %s174 = int_to_ptr.vmem [resolvable:$true] %s173
          %179 = dma.hbm_to_vmem [thread:$0]  %s172, 2304, %s174, [#allocation3], 64, 64, 4
        $region16: #{tpu_custom_call.1} parent=11 // pred_fallthru
          _
        // Predicated region
        $region17: #{tpu_custom_call.1} parent=11 // pred_check
          %p180 = pneg %p83
        $region18: #{tpu_custom_call.1} parent=11 // pred_check_branch
          %182 = sbr.rel (%p180) target = $region20
        $region19: #{tpu_custom_call.1} parent=11 // pred_region
          _
        $region20: #{tpu_custom_call.1} parent=11 // pred_fallthru
          _
        // Predicated region
        $region21: #{tpu_custom_call.1} parent=11 // pred_check
          %p183 = pneg %p104
        $region22: #{tpu_custom_call.1} parent=11 // pred_check_branch
          %185 = sbr.rel (%p183) target = $region24
        $region23: #{tpu_custom_call.1} parent=11 // pred_region
          _
        $region24: #{tpu_custom_call.1} parent=11 // pred_fallthru
          _
        // Predicated region
        $region25: #{tpu_custom_call.1} parent=11 // pred_check
          %p186 = pneg %p125
        $region26: #{tpu_custom_call.1} parent=11 // pred_check_branch
          %188 = sbr.rel (%p186) target = $region28
        $region27: #{tpu_custom_call.1} parent=11 // pred_region
          _
        $region28: #{tpu_custom_call.1} parent=11 // pred_fallthru
          _
      $region12: #{tpu_custom_call.1} parent=5 // pred_fallthru
        _
      %p189 = scmp.lt.s32.totalorder %s15, 2
      // Predicated region
      $region29: #{tpu_custom_call.1} parent=5 // pred_check
        %p190 = pneg %p189
      $region30: #{tpu_custom_call.1} parent=5 // pred_check_branch
        %192 = sbr.rel (%p190) target = $region32
      $region31: #{tpu_custom_call.1} parent=5 // pred_region
        // Predicated region
        $region33: #{tpu_custom_call.1} parent=31 // pred_check
          %p193 = pneg %p35
        $region34: #{tpu_custom_call.1} parent=31 // pred_check_branch
          %195 = sbr.rel (%p193) target = $region36
        $region35: #{tpu_custom_call.1} parent=31 // pred_region
          %s196 = smul.u32 11, %s15
          %p197 = scmp.lt.s32.totalorder %s196, 21
          %s198 = scalar_select %p197, %s196, 21
          %s199 = smul.addr %s198, 3
          %s200 = smul.addr %s199, 4
          %s201 = scalar_lea.vmem %s0, %s200
          %s202 = smul.u32 11, %s15
        $region36: #{tpu_custom_call.1} parent=31 // pred_fallthru
          _
      $region32: #{tpu_custom_call.1} parent=5 // pred_fallthru
        _
      %p203 = scmp.le.s32.totalorder 1, %s15
      %p204 = scmp.lt.s32.totalorder %s15, 3
      %p205 = pnand %p203, %p204
      %p206 = pneg %p205
      // Predicated region
      $region37: #{tpu_custom_call.1} parent=5 // pred_check
        _
      $region38: #{tpu_custom_call.1} parent=5 // pred_check_branch
        %208 = sbr.rel (%p205) target = $region40
      $region39: #{tpu_custom_call.1} parent=5 // pred_region
        %s209 = ssub.s32 %s15, 1
        // Predicated region
        $region41: #{tpu_custom_call.1} parent=39 // pred_check
          %p210 = pneg %p62
        $region42: #{tpu_custom_call.1} parent=39 // pred_check_branch
          %212 = sbr.rel (%p210) target = $region44
        $region43: #{tpu_custom_call.1} parent=39 // pred_region
          %214 = dma.done [#allocation3], 2304
        $region44: #{tpu_custom_call.1} parent=39 // pred_fallthru
          _
        %s215 = smul.u32 11, %s20
        %p216 = scmp.lt.s32.totalorder %s215, 21
        %s217 = scalar_select %p216, %s215, 21
        %s218 = smul.addr %s217, 3
        %s219 = smul.addr %s218, 4
        %s220 = scalar_lea.vmem %s0, %s219
        %p221 = pneg %p41
        %p222 = pneg %p38
        %p223 = pneg %p62
        %p224 = pneg %p59
        %p225 = pneg %p83
        %p226 = pneg %p80
        %p227 = pneg %p104
        %p228 = pneg %p101
        %p229 = pneg %p125
        %p230 = pneg %p122
        %p231 = pneg %p151
        %p232 = pneg %p148
        %s233 = sand.u32 %s138, 1
        %s234 = scalar_lea.sflag [#allocation4], %s233
        %s235 = sand.u32 %s138, 1
        %s236 = smul.addr %s235, 132
        %s237 = scalar_lea.vmem [#allocation5], %s236
        %s238 = smul.u32 11, %s20
        %p239 = scmp.lt.s32.totalorder %s238, 21
        %s240 = scalar_select %p239, %s238, 21
        %s241 = smul.addr %s240, 3
        %s242 = smul.addr %s241, 4
        %s243 = scalar_lea.vmem %s0, %s242
        %s244 = smul.u32 11, %s20
        %s245 = smul.u32 11, %s20
        %v247 = vld [vmem:[%s243] sm:$0xff]
        %v248 = vld [vmem:[%s243 + $0x8] sm:$0xf]
        %v249 = vld [vmem:[%s243 + $0xc] sm:$0xff]
        %v250 = vld [vmem:[%s243 + $0x14] sm:$0xf]
        %v251 = vld [vmem:[%s243 + $0x18] sm:$0xff]
        %v252 = vld [vmem:[%s243 + $0x20] sm:$0xf]
        %v253 = vld [vmem:[%s243 + $0x24] sm:$0xff]
        %v254 = vld [vmem:[%s243 + $0x2c] sm:$0xf]
        %v255 = vld [vmem:[%s243 + $0x30] sm:$0xff]
        %v256 = vld [vmem:[%s243 + $0x38] sm:$0xf]
        %v257 = vld [vmem:[%s243 + $0x3c] sm:$0xff]
        %v258 = vld [vmem:[%s243 + $0x44] sm:$0xf]
        %v259 = vld [vmem:[%s243 + $0x48] sm:$0xff]
        %v260 = vld [vmem:[%s243 + $0x50] sm:$0xf]
        %v261 = vld [vmem:[%s243 + $0x54] sm:$0xff]
        %v262 = vld [vmem:[%s243 + $0x5c] sm:$0xf]
        %v263 = vld [vmem:[%s243 + $0x60] sm:$0xff]
        %v264 = vld [vmem:[%s243 + $0x68] sm:$0xf]
        %v265 = vld [vmem:[%s243 + $0x6c] sm:$0xff]
        %v266 = vld [vmem:[%s243 + $0x74] sm:$0xf]
        %v267 = vld [vmem:[%s243 + $0x78] sm:$0xff]
        %v268 = vld [vmem:[%s243 + $0x80] sm:$0xf]
        %v269 = vld [vmem:[#allocation2] sm:$0xf]
        %v270 = vld [vmem:[#allocation2 + $0x4] sm:$0xf]
        %v271 = vld [vmem:[#allocation2 + $0x8] sm:$0xf]
        %v272 = vld [vmem:[#allocation2 + $0xc] sm:$0xf]
        %v273 = vld [vmem:[#allocation2 + $0x10] sm:$0xf]
        %v274 = vld [vmem:[#allocation2 + $0x14] sm:$0xf]
        %v275 = vld [vmem:[#allocation2 + $0x18] sm:$0xf]
        %v276 = vld [vmem:[#allocation2 + $0x1c] sm:$0xf]
        %v277 = vld [vmem:[#allocation2 + $0x20] sm:$0xf]
        %v278 = vld [vmem:[#allocation2 + $0x24] sm:$0xf]
        %v279 = vld [vmem:[#allocation2 + $0x28] sm:$0xf]
        %v280 = vld [vmem:[#allocation2 + $0x2c] sm:$0xf]
        %v281 = vld [vmem:[#allocation2 + $0x30] sm:$0xf]
        %v282 = vld [vmem:[#allocation2 + $0x34] sm:$0xf]
        %v283 = vld [vmem:[#allocation2 + $0x38] sm:$0xf]
        %v284 = vld [vmem:[#allocation2 + $0x3c] sm:$0xf]
        %v285 = vld [vmem:[#allocation2 + $0x40] sm:$0xf]
        %v286 = vld [vmem:[#allocation2 + $0x44] sm:$0xf]
        %v287 = vld [vmem:[#allocation2 + $0x48] sm:$0xf]
        %v288 = vld [vmem:[#allocation2 + $0x4c] sm:$0xf]
        %v289 = vld [vmem:[#allocation2 + $0x50] sm:$0xf]
        %v290 = vld [vmem:[#allocation2 + $0x54] sm:$0xf]
        %v291 = vld [vmem:[#allocation2 + $0x58] sm:$0xf]
        %v292 = vld [vmem:[#allocation2 + $0x5c] sm:$0xf]
        %v293 = vld [vmem:[#allocation2 + $0x60] sm:$0xf]
        %v294 = vld [vmem:[#allocation2 + $0x64] sm:$0xf]
        %v295 = vld [vmem:[#allocation2 + $0x68] sm:$0xf]
        %v296 = vld [vmem:[#allocation2 + $0x6c] sm:$0xf]
        %v297 = vld [vmem:[#allocation2 + $0x70] sm:$0xf]
        %v298 = vld [vmem:[#allocation2 + $0x74] sm:$0xf]
        %v299 = vld [vmem:[#allocation2 + $0x78] sm:$0xf]
        %v300 = vld [vmem:[#allocation2 + $0x7c] sm:$0xf]
        %v301 = vld [vmem:[#allocation2 + $0x80] sm:$0xf]
        %v302 = vld [vmem:[#allocation2 + $0x84] sm:$0xf]
        %v303 = vld [vmem:[#allocation2 + $0x88] sm:$0xf]
        %v304 = vld [vmem:[#allocation2 + $0x8c] sm:$0xf]
        %v305 = vld [vmem:[%s2] sm:$0x1]
        %v307 = vperm.slane %v305, 0
        %v331 = vunpack.c.l.b16 %v247
        %v332 = vunpack.c.h.b16 %v247
        %v333 = vunpack.c.l.b16 %v248
        %v334 = vunpack.c.l.b16 %v249
        %v335 = vunpack.c.h.b16 %v249
        %v336 = vunpack.c.l.b16 %v250
        %v337 = vunpack.c.l.b16 %v251
        %v338 = vunpack.c.h.b16 %v251
        %v339 = vunpack.c.l.b16 %v252
        %v340 = vunpack.c.l.b16 %v253
        %v341 = vunpack.c.h.b16 %v253
        %v342 = vunpack.c.l.b16 %v254
        %v343 = vunpack.c.l.b16 %v255
        %v344 = vunpack.c.h.b16 %v255
        %v345 = vunpack.c.l.b16 %v256
        %v346 = vunpack.c.l.b16 %v257
        %v347 = vunpack.c.h.b16 %v257
        %v348 = vunpack.c.l.b16 %v258
        %v349 = vunpack.c.l.b16 %v259
        %v350 = vunpack.c.h.b16 %v259
        %v351 = vunpack.c.l.b16 %v260
        %v352 = vunpack.c.l.b16 %v261
        %v353 = vunpack.c.h.b16 %v261
        %v354 = vunpack.c.l.b16 %v262
        %v355 = vunpack.c.l.b16 %v263
        %v356 = vunpack.c.h.b16 %v263
        %v357 = vunpack.c.l.b16 %v264
        %v358 = vunpack.c.l.b16 %v265
        %v359 = vunpack.c.h.b16 %v265
        %v360 = vunpack.c.l.b16 %v266
        %v361 = vunpack.c.l.b16 %v267
        %v362 = vunpack.c.h.b16 %v267
        %v363 = vunpack.c.l.b16 %v268
        %v364 = vpack.c.b16 %v334, %v331
        %v365 = vpack.c.b16 %v335, %v332
        %v366 = vpack.c.b16 %v336, %v333
        %v367 = vpack.c.b16 %v340, %v337
        %v368 = vpack.c.b16 %v341, %v338
        %v369 = vpack.c.b16 %v342, %v339
        %v370 = vpack.c.b16 %v346, %v343
        %v371 = vpack.c.b16 %v347, %v344
        %v372 = vpack.c.b16 %v348, %v345
        %v373 = vpack.c.b16 %v352, %v349
        %v374 = vpack.c.b16 %v353, %v350
        %v375 = vpack.c.b16 %v354, %v351
        %v376 = vpack.c.b16 %v358, %v355
        %v377 = vpack.c.b16 %v359, %v356
        %v378 = vpack.c.b16 %v360, %v357
        %v379 = vpack.c.b16 %v361, %v361
        %v380 = vpack.c.b16 %v362, %v362
        %v381 = vpack.c.b16 %v363, %v363
        %v430 = vunpack.c.l.b16 %v269
        %v431 = vunpack.c.l.b16 %v270
        %v432 = vunpack.c.l.b16 %v271
        %v433 = vunpack.c.l.b16 %v272
        %v434 = vunpack.c.l.b16 %v273
        %v435 = vunpack.c.l.b16 %v274
        %v436 = vunpack.c.l.b16 %v275
        %v437 = vunpack.c.l.b16 %v276
        %v438 = vunpack.c.l.b16 %v277
        %v439 = vunpack.c.l.b16 %v278
        %v440 = vunpack.c.l.b16 %v279
        %v441 = vunpack.c.l.b16 %v280
        %v442 = vunpack.c.l.b16 %v281
        %v443 = vunpack.c.l.b16 %v282
        %v444 = vunpack.c.l.b16 %v283
        %v445 = vunpack.c.l.b16 %v284
        %v446 = vunpack.c.l.b16 %v285
        %v447 = vunpack.c.l.b16 %v286
        %v448 = vunpack.c.l.b16 %v287
        %v449 = vunpack.c.l.b16 %v288
        %v450 = vunpack.c.l.b16 %v289
        %v451 = vunpack.c.l.b16 %v290
        %v452 = vunpack.c.l.b16 %v291
        %v453 = vunpack.c.l.b16 %v292
        %v454 = vunpack.c.l.b16 %v293
        %v455 = vunpack.c.l.b16 %v294
        %v456 = vunpack.c.l.b16 %v295
        %v457 = vunpack.c.l.b16 %v296
        %v458 = vunpack.c.l.b16 %v297
        %v459 = vunpack.c.l.b16 %v298
        %v460 = vunpack.c.l.b16 %v299
        %v461 = vunpack.c.l.b16 %v300
        %v462 = vunpack.c.l.b16 %v301
        %v463 = vunpack.c.l.b16 %v302
        %v464 = vunpack.c.l.b16 %v303
        %v465 = vunpack.c.l.b16 %v304
        %v466 = vpack.c.b16 %v431, %v430
        %v467 = vpack.c.b16 %v433, %v432
        %v468 = vpack.c.b16 %v435, %v434
        %v469 = vpack.c.b16 %v437, %v436
        %v470 = vpack.c.b16 %v439, %v438
        %v471 = vpack.c.b16 %v441, %v440
        %v472 = vpack.c.b16 %v443, %v442
        %v473 = vpack.c.b16 %v445, %v444
        %v474 = vpack.c.b16 %v447, %v446
        %v475 = vpack.c.b16 %v449, %v448
        %v476 = vpack.c.b16 %v451, %v450
        %v477 = vpack.c.b16 %v453, %v452
        %v478 = vpack.c.b16 %v455, %v454
        %v479 = vpack.c.b16 %v457, %v456
        %v480 = vpack.c.b16 %v459, %v458
        %v481 = vpack.c.b16 %v461, %v460
        %v482 = vpack.c.b16 %v463, %v462
        %v483 = vpack.c.b16 %v465, %v464
        %vm502 = vcmask 261120
        %v504 = vsel %vm502, %v366, 0
        %v507 = vsel %vm502, %v369, 0
        %v510 = vsel %vm502, %v372, 0
        %v513 = vsel %vm502, %v375, 0
        %v516 = vsel %vm502, %v378, 0
        %v519 = vsel %vm502, %v381, 0
        %521 = vmatpush.bf16.msra.mxu0 %v473
        %522 = vmatpush.bf16.msra.mxu0 %v472
        %523 = vmatpush.bf16.msra.mxu0 %v471
        %524 = vmatpush.bf16.msra.mxu0 %v470
        %525 = vmatpush.bf16.msra.mxu0 %v469
        %526 = vmatpush.bf16.msra.mxu0 %v468
        %527 = vmatpush.bf16.msra.mxu0 %v467
        %528 = vmatpush.bf16.msra.mxu0 %v466
        %529 = vmatmul.bf16.gmra.mxu0 %v364
        %v530 = vpop.f32.mrf.mxu0
        %v531 = vadd.f32 %v307, %v530
        %v532 = vpop.f32.mrf.mxu0
        %v533 = vadd.f32 %v307, %v532
        %534 = vmatmul.bf16.gmra.mxu0 %v367
        %v535 = vpop.f32.mrf.mxu0
        %v536 = vadd.f32 %v307, %v535
        %v537 = vpop.f32.mrf.mxu0
        %v538 = vadd.f32 %v307, %v537
        %539 = vmatmul.bf16.gmra.mxu0 %v370
        %v540 = vpop.f32.mrf.mxu0
        %v541 = vadd.f32 %v307, %v540
        %v542 = vpop.f32.mrf.mxu0
        %v543 = vadd.f32 %v307, %v542
        %544 = vmatmul.bf16.gmra.mxu0 %v373
        %v545 = vpop.f32.mrf.mxu0
        %v546 = vadd.f32 %v307, %v545
        %v547 = vpop.f32.mrf.mxu0
        %v548 = vadd.f32 %v307, %v547
        %549 = vmatmul.bf16.gmra.mxu0 %v376
        %v550 = vpop.f32.mrf.mxu0
        %v551 = vadd.f32 %v307, %v550
        %v552 = vpop.f32.mrf.mxu0
        %v553 = vadd.f32 %v307, %v552
        %554 = vmatmul.bf16.gmra.mxu0 %v379
        %v555 = vpop.f32.mrf.mxu0
        %v556 = vadd.f32 %v307, %v555
        %v557 = vpop.f32.mrf.mxu0
        %558 = vdwg.mxu0
        %559 = vmatpush.bf16.msra.mxu0 %v481
        %560 = vmatpush.bf16.msra.mxu0 %v480
        %561 = vmatpush.bf16.msra.mxu0 %v479
        %562 = vmatpush.bf16.msra.mxu0 %v478
        %563 = vmatpush.bf16.msra.mxu0 %v477
        %564 = vmatpush.bf16.msra.mxu0 %v476
        %565 = vmatpush.bf16.msra.mxu0 %v475
        %566 = vmatpush.bf16.msra.mxu0 %v474
        %567 = vmatmul.bf16.gmra.mxu0 %v365
        %v568 = vpop.f32.mrf.mxu0
        %v569 = vadd.f32 %v531, %v568
        %v570 = vpop.f32.mrf.mxu0
        %v571 = vadd.f32 %v533, %v570
        %572 = vmatmul.bf16.gmra.mxu0 %v368
        %v573 = vpop.f32.mrf.mxu0
        %v574 = vadd.f32 %v536, %v573
        %v575 = vpop.f32.mrf.mxu0
        %v576 = vadd.f32 %v538, %v575
        %577 = vmatmul.bf16.gmra.mxu0 %v371
        %v578 = vpop.f32.mrf.mxu0
        %v579 = vadd.f32 %v541, %v578
        %v580 = vpop.f32.mrf.mxu0
        %v581 = vadd.f32 %v543, %v580
        %582 = vmatmul.bf16.gmra.mxu0 %v374
        %v583 = vpop.f32.mrf.mxu0
        %v584 = vadd.f32 %v546, %v583
        %v585 = vpop.f32.mrf.mxu0
        %v586 = vadd.f32 %v548, %v585
        %587 = vmatmul.bf16.gmra.mxu0 %v377
        %v588 = vpop.f32.mrf.mxu0
        %v589 = vadd.f32 %v551, %v588
        %v590 = vpop.f32.mrf.mxu0
        %v591 = vadd.f32 %v553, %v590
        %592 = vmatmul.bf16.gmra.mxu0 %v380
        %v593 = vpop.f32.mrf.mxu0
        %v594 = vadd.f32 %v556, %v593
        %v595 = vpop.f32.mrf.mxu0
        %596 = vdwg.mxu0
        %597 = vmatpush.bf16.msra.mxu0 0
        %598 = vmatpush.bf16.msra.mxu0 0
        %599 = vmatpush.bf16.msra.mxu0 0
        %600 = vmatpush.bf16.msra.mxu0 0
        %601 = vmatpush.bf16.msra.mxu0 0
        %602 = vmatpush.bf16.msra.mxu0 0
        %603 = vmatpush.bf16.msra.mxu0 %v483
        %604 = vmatpush.bf16.msra.mxu0 %v482
        %605 = vmatmul.bf16.gmra.mxu0 %v504
        %v606 = vpop.f32.mrf.mxu0
        %v607 = vadd.f32 %v569, %v606
        %v608 = vpop.f32.mrf.mxu0
        %v609 = vadd.f32 %v571, %v608
        %610 = vmatmul.bf16.gmra.mxu0 %v507
        %v611 = vpop.f32.mrf.mxu0
        %v612 = vadd.f32 %v574, %v611
        %v613 = vpop.f32.mrf.mxu0
        %v614 = vadd.f32 %v576, %v613
        %615 = vmatmul.bf16.gmra.mxu0 %v510
        %v616 = vpop.f32.mrf.mxu0
        %v617 = vadd.f32 %v579, %v616
        %v618 = vpop.f32.mrf.mxu0
        %v619 = vadd.f32 %v581, %v618
        %620 = vmatmul.bf16.gmra.mxu0 %v513
        %v621 = vpop.f32.mrf.mxu0
        %v622 = vadd.f32 %v584, %v621
        %v623 = vpop.f32.mrf.mxu0
        %v624 = vadd.f32 %v586, %v623
        %625 = vmatmul.bf16.gmra.mxu0 %v516
        %v626 = vpop.f32.mrf.mxu0
        %v627 = vadd.f32 %v589, %v626
        %v628 = vpop.f32.mrf.mxu0
        %v629 = vadd.f32 %v591, %v628
        %630 = vmatmul.bf16.gmra.mxu0 %v519
        %v631 = vpop.f32.mrf.mxu0
        %v632 = vadd.f32 %v594, %v631
        %v633 = vpop.f32.mrf.mxu0
        %634 = vdwg.mxu0
        %v635 = vmax.f32 %v607, 0.0
        %v636 = vmax.f32 %v609, 0.0
        %v637 = vmax.f32 %v612, 0.0
        %v638 = vmax.f32 %v614, 0.0
        %v639 = vmax.f32 %v617, 0.0
        %v640 = vmax.f32 %v619, 0.0
        %v641 = vmax.f32 %v622, 0.0
        %v642 = vmax.f32 %v624, 0.0
        %v643 = vmax.f32 %v627, 0.0
        %v644 = vmax.f32 %v629, 0.0
        %v645 = vmax.f32 %v632, 0.0
        %v646 = vpack.c.bf16 %v636, %v635
        %v647 = vpack.c.bf16 %v638, %v637
        %v648 = vpack.c.bf16 %v640, %v639
        %v649 = vpack.c.bf16 %v642, %v641
        %v650 = vpack.c.bf16 %v644, %v643
        %v651 = vpack.c.bf16 %v645, %v645
        %v652 = vld [vmem:[%s3] sm:$0xff]
        %v653 = vld [vmem:[%s3 + $0x8] sm:$0xf]
        %v654 = vld [vmem:[%s3 + $0xc] sm:$0xff]
        %v655 = vld [vmem:[%s3 + $0x14] sm:$0xf]
        %v656 = vld [vmem:[%s3 + $0x18] sm:$0xff]
        %v657 = vld [vmem:[%s3 + $0x20] sm:$0xf]
        %v658 = vld [vmem:[%s3 + $0x24] sm:$0xff]
        %v659 = vld [vmem:[%s3 + $0x2c] sm:$0xf]
        %v660 = vld [vmem:[%s3 + $0x30] sm:$0xff]
        %v661 = vld [vmem:[%s3 + $0x38] sm:$0xf]
        %v662 = vld [vmem:[%s3 + $0x3c] sm:$0xff]
        %v663 = vld [vmem:[%s3 + $0x44] sm:$0xf]
        %v664 = vld [vmem:[%s3 + $0x48] sm:$0xff]
        %v665 = vld [vmem:[%s3 + $0x50] sm:$0xf]
        %v666 = vld [vmem:[%s3 + $0x54] sm:$0xff]
        %v667 = vld [vmem:[%s3 + $0x5c] sm:$0xf]
        %v668 = vld [vmem:[%s3 + $0x60] sm:$0xff]
        %v669 = vld [vmem:[%s3 + $0x68] sm:$0xf]
        %v670 = vld [vmem:[%s3 + $0x6c] sm:$0xff]
        %v671 = vld [vmem:[%s3 + $0x74] sm:$0xf]
        %v672 = vld [vmem:[%s3 + $0x78] sm:$0xff]
        %v673 = vld [vmem:[%s3 + $0x80] sm:$0xf]
        %v674 = vld [vmem:[%s3 + $0x84] sm:$0xff]
        %v675 = vld [vmem:[%s3 + $0x8c] sm:$0xf]
        %v676 = vld [vmem:[%s3 + $0x90] sm:$0xff]
        %v677 = vld [vmem:[%s3 + $0x98] sm:$0xf]
        %v678 = vld [vmem:[%s3 + $0x9c] sm:$0xff]
        %v679 = vld [vmem:[%s3 + $0xa4] sm:$0xf]
        %v680 = vld [vmem:[%s3 + $0xa8] sm:$0xff]
        %v681 = vld [vmem:[%s3 + $0xb0] sm:$0xf]
        %v682 = vld [vmem:[%s3 + $0xb4] sm:$0xff]
        %v683 = vld [vmem:[%s3 + $0xbc] sm:$0xf]
        %v684 = vld [vmem:[%s4] sm:$0x7]
        %v686 = vperm.slane %v684, 0
        %v687 = vperm.slane %v684, 1
        %v688 = vperm.slane %v684, 2
        %v724 = vunpack.c.l.b16 %v652
        %v725 = vunpack.c.h.b16 %v652
        %v726 = vunpack.c.l.b16 %v653
        %v727 = vunpack.c.l.b16 %v654
        %v728 = vunpack.c.h.b16 %v654
        %v729 = vunpack.c.l.b16 %v655
        %v730 = vunpack.c.l.b16 %v656
        %v731 = vunpack.c.h.b16 %v656
        %v732 = vunpack.c.l.b16 %v657
        %v733 = vunpack.c.l.b16 %v658
        %v734 = vunpack.c.h.b16 %v658
        %v735 = vunpack.c.l.b16 %v659
        %v736 = vunpack.c.l.b16 %v660
        %v737 = vunpack.c.h.b16 %v660
        %v738 = vunpack.c.l.b16 %v661
        %v739 = vunpack.c.l.b16 %v662
        %v740 = vunpack.c.h.b16 %v662
        %v741 = vunpack.c.l.b16 %v663
        %v742 = vunpack.c.l.b16 %v664
        %v743 = vunpack.c.h.b16 %v664
        %v744 = vunpack.c.l.b16 %v665
        %v745 = vunpack.c.l.b16 %v666
        %v746 = vunpack.c.h.b16 %v666
        %v747 = vunpack.c.l.b16 %v667
        %v748 = vunpack.c.l.b16 %v668
        %v749 = vunpack.c.h.b16 %v668
        %v750 = vunpack.c.l.b16 %v669
        %v751 = vunpack.c.l.b16 %v670
        %v752 = vunpack.c.h.b16 %v670
        %v753 = vunpack.c.l.b16 %v671
        %v754 = vunpack.c.l.b16 %v672
        %v755 = vunpack.c.h.b16 %v672
        %v756 = vunpack.c.l.b16 %v673
        %v757 = vunpack.c.l.b16 %v674
        %v758 = vunpack.c.h.b16 %v674
        %v759 = vunpack.c.l.b16 %v675
        %v760 = vunpack.c.l.b16 %v676
        %v761 = vunpack.c.h.b16 %v676
        %v762 = vunpack.c.l.b16 %v677
        %v763 = vunpack.c.l.b16 %v678
        %v764 = vunpack.c.h.b16 %v678
        %v765 = vunpack.c.l.b16 %v679
        %v766 = vunpack.c.l.b16 %v680
        %v767 = vunpack.c.h.b16 %v680
        %v768 = vunpack.c.l.b16 %v681
        %v769 = vunpack.c.l.b16 %v682
        %v770 = vunpack.c.h.b16 %v682
        %v771 = vunpack.c.l.b16 %v683
        %v772 = vpack.c.b16 %v727, %v724
        %v773 = vpack.c.b16 %v728, %v725
        %v774 = vpack.c.b16 %v729, %v726
        %v775 = vpack.c.b16 %v733, %v730
        %v776 = vpack.c.b16 %v734, %v731
        %v777 = vpack.c.b16 %v735, %v732
        %v778 = vpack.c.b16 %v739, %v736
        %v779 = vpack.c.b16 %v740, %v737
        %v780 = vpack.c.b16 %v741, %v738
        %v781 = vpack.c.b16 %v745, %v742
        %v782 = vpack.c.b16 %v746, %v743
        %v783 = vpack.c.b16 %v747, %v744
        %v784 = vpack.c.b16 %v751, %v748
        %v785 = vpack.c.b16 %v752, %v749
        %v786 = vpack.c.b16 %v753, %v750
        %v787 = vpack.c.b16 %v757, %v754
        %v788 = vpack.c.b16 %v758, %v755
        %v789 = vpack.c.b16 %v759, %v756
        %v790 = vpack.c.b16 %v763, %v760
        %v791 = vpack.c.b16 %v764, %v761
        %v792 = vpack.c.b16 %v765, %v762
        %v793 = vpack.c.b16 %v769, %v766
        %v794 = vpack.c.b16 %v770, %v767
        %v795 = vpack.c.b16 %v771, %v768
        %820 = vmatpush.bf16.msra.mxu0 %v793
        %821 = vmatpush.bf16.msra.mxu0 %v790
        %822 = vmatpush.bf16.msra.mxu0 %v787
        %823 = vmatpush.bf16.msra.mxu0 %v784
        %824 = vmatpush.bf16.msra.mxu0 %v781
        %825 = vmatpush.bf16.msra.mxu0 %v778
        %826 = vmatpush.bf16.msra.mxu0 %v775
        %827 = vmatpush.bf16.msra.mxu0 %v772
        %828 = vmatmul.bf16.gmra.mxu0 %v646
        %v829 = vpop.f32.mrf.mxu0
        %v830 = vadd.f32 %v686, %v829
        %v831 = vpop.f32.mrf.mxu0
        %v832 = vadd.f32 %v686, %v831
        %833 = vmatmul.bf16.gmra.mxu0 %v647
        %v834 = vpop.f32.mrf.mxu0
        %v835 = vadd.f32 %v686, %v834
        %v836 = vpop.f32.mrf.mxu0
        %v837 = vadd.f32 %v686, %v836
        %838 = vmatmul.bf16.gmra.mxu0 %v648
        %v839 = vpop.f32.mrf.mxu0
        %v840 = vadd.f32 %v686, %v839
        %v841 = vpop.f32.mrf.mxu0
        %v842 = vadd.f32 %v686, %v841
        %843 = vmatmul.bf16.gmra.mxu0 %v649
        %v844 = vpop.f32.mrf.mxu0
        %v845 = vadd.f32 %v686, %v844
        %v846 = vpop.f32.mrf.mxu0
        %v847 = vadd.f32 %v686, %v846
        %848 = vmatmul.bf16.gmra.mxu0 %v650
        %v849 = vpop.f32.mrf.mxu0
        %v850 = vadd.f32 %v686, %v849
        %v851 = vpop.f32.mrf.mxu0
        %v852 = vadd.f32 %v686, %v851
        %853 = vmatmul.bf16.gmra.mxu0 %v651
        %v854 = vpop.f32.mrf.mxu0
        %v855 = vadd.f32 %v686, %v854
        %v856 = vpop.f32.mrf.mxu0
        %857 = vdwg.mxu0
        %858 = vmatpush.bf16.msra.mxu0 %v794
        %859 = vmatpush.bf16.msra.mxu0 %v791
        %860 = vmatpush.bf16.msra.mxu0 %v788
        %861 = vmatpush.bf16.msra.mxu0 %v785
        %862 = vmatpush.bf16.msra.mxu0 %v782
        %863 = vmatpush.bf16.msra.mxu0 %v779
        %864 = vmatpush.bf16.msra.mxu0 %v776
        %865 = vmatpush.bf16.msra.mxu0 %v773
        %866 = vmatmul.bf16.gmra.mxu0 %v646
        %v867 = vpop.f32.mrf.mxu0
        %v868 = vadd.f32 %v687, %v867
        %v869 = vpop.f32.mrf.mxu0
        %v870 = vadd.f32 %v687, %v869
        %871 = vmatmul.bf16.gmra.mxu0 %v647
        %v872 = vpop.f32.mrf.mxu0
        %v873 = vadd.f32 %v687, %v872
        %v874 = vpop.f32.mrf.mxu0
        %v875 = vadd.f32 %v687, %v874
        %876 = vmatmul.bf16.gmra.mxu0 %v648
        %v877 = vpop.f32.mrf.mxu0
        %v878 = vadd.f32 %v687, %v877
        %v879 = vpop.f32.mrf.mxu0
        %v880 = vadd.f32 %v687, %v879
        %881 = vmatmul.bf16.gmra.mxu0 %v649
        %v882 = vpop.f32.mrf.mxu0
        %v883 = vadd.f32 %v687, %v882
        %v884 = vpop.f32.mrf.mxu0
        %v885 = vadd.f32 %v687, %v884
        %886 = vmatmul.bf16.gmra.mxu0 %v650
        %v887 = vpop.f32.mrf.mxu0
        %v888 = vadd.f32 %v687, %v887
        %v889 = vpop.f32.mrf.mxu0
        %v890 = vadd.f32 %v687, %v889
        %891 = vmatmul.bf16.gmra.mxu0 %v651
        %v892 = vpop.f32.mrf.mxu0
        %v893 = vadd.f32 %v687, %v892
        %v894 = vpop.f32.mrf.mxu0
        %895 = vdwg.mxu0
        %896 = vmatpush.bf16.msra.mxu0 %v795
        %897 = vmatpush.bf16.msra.mxu0 %v792
        %898 = vmatpush.bf16.msra.mxu0 %v789
        %899 = vmatpush.bf16.msra.mxu0 %v786
        %900 = vmatpush.bf16.msra.mxu0 %v783
        %901 = vmatpush.bf16.msra.mxu0 %v780
        %902 = vmatpush.bf16.msra.mxu0 %v777
        %903 = vmatpush.bf16.msra.mxu0 %v774
        %904 = vmatmul.bf16.gmra.mxu0 %v646
        %v905 = vpop.f32.mrf.mxu0
        %v906 = vadd.f32 %v688, %v905
        %v907 = vpop.f32.mrf.mxu0
        %v908 = vadd.f32 %v688, %v907
        %909 = vmatmul.bf16.gmra.mxu0 %v647
        %v910 = vpop.f32.mrf.mxu0
        %v911 = vadd.f32 %v688, %v910
        %v912 = vpop.f32.mrf.mxu0
        %v913 = vadd.f32 %v688, %v912
        %914 = vmatmul.bf16.gmra.mxu0 %v648
        %v915 = vpop.f32.mrf.mxu0
        %v916 = vadd.f32 %v688, %v915
        %v917 = vpop.f32.mrf.mxu0
        %v918 = vadd.f32 %v688, %v917
        %919 = vmatmul.bf16.gmra.mxu0 %v649
        %v920 = vpop.f32.mrf.mxu0
        %v921 = vadd.f32 %v688, %v920
        %v922 = vpop.f32.mrf.mxu0
        %v923 = vadd.f32 %v688, %v922
        %924 = vmatmul.bf16.gmra.mxu0 %v650
        %v925 = vpop.f32.mrf.mxu0
        %v926 = vadd.f32 %v688, %v925
        %v927 = vpop.f32.mrf.mxu0
        %v928 = vadd.f32 %v688, %v927
        %929 = vmatmul.bf16.gmra.mxu0 %v651
        %v930 = vpop.f32.mrf.mxu0
        %v931 = vadd.f32 %v688, %v930
        %v932 = vpop.f32.mrf.mxu0
        %933 = vdwg.mxu0
        %v934 = vpack.c.bf16 %v868, %v830
        %v935 = vpack.c.bf16 %v906, %v906
        %v936 = vpack.c.bf16 %v870, %v832
        %v937 = vpack.c.bf16 %v908, %v908
        %v938 = vpack.c.bf16 %v873, %v835
        %v939 = vpack.c.bf16 %v911, %v911
        %v940 = vpack.c.bf16 %v875, %v837
        %v941 = vpack.c.bf16 %v913, %v913
        %v942 = vpack.c.bf16 %v878, %v840
        %v943 = vpack.c.bf16 %v916, %v916
        %v944 = vpack.c.bf16 %v880, %v842
        %v945 = vpack.c.bf16 %v918, %v918
        %v946 = vpack.c.bf16 %v883, %v845
        %v947 = vpack.c.bf16 %v921, %v921
        %v948 = vpack.c.bf16 %v885, %v847
        %v949 = vpack.c.bf16 %v923, %v923
        %v950 = vpack.c.bf16 %v888, %v850
        %v951 = vpack.c.bf16 %v926, %v926
        %v952 = vpack.c.bf16 %v890, %v852
        %v953 = vpack.c.bf16 %v928, %v928
        %v954 = vpack.c.bf16 %v893, %v855
        %v955 = vpack.c.bf16 %v931, %v931
        %956 = vst [vmem:[%s237] sm:$0xff] %v934
        %vm957 = vcmask 257024
        %958 = vst.msk [vmem:[%s237 + $0x8] sm:$0xf] %vm957, %v935
        %959 = vst [vmem:[%s237 + $0xc] sm:$0xff] %v936
        %960 = vst.msk [vmem:[%s237 + $0x14] sm:$0xf] %vm957, %v937
        %961 = vst [vmem:[%s237 + $0x18] sm:$0xff] %v938
        %962 = vst.msk [vmem:[%s237 + $0x20] sm:$0xf] %vm957, %v939
        %963 = vst [vmem:[%s237 + $0x24] sm:$0xff] %v940
        %964 = vst.msk [vmem:[%s237 + $0x2c] sm:$0xf] %vm957, %v941
        %965 = vst [vmem:[%s237 + $0x30] sm:$0xff] %v942
        %966 = vst.msk [vmem:[%s237 + $0x38] sm:$0xf] %vm957, %v943
        %967 = vst [vmem:[%s237 + $0x3c] sm:$0xff] %v944
        %968 = vst.msk [vmem:[%s237 + $0x44] sm:$0xf] %vm957, %v945
        %969 = vst [vmem:[%s237 + $0x48] sm:$0xff] %v946
        %970 = vst.msk [vmem:[%s237 + $0x50] sm:$0xf] %vm957, %v947
        %971 = vst [vmem:[%s237 + $0x54] sm:$0xff] %v948
        %972 = vst.msk [vmem:[%s237 + $0x5c] sm:$0xf] %vm957, %v949
        %973 = vst [vmem:[%s237 + $0x60] sm:$0xff] %v950
        %974 = vst.msk [vmem:[%s237 + $0x68] sm:$0xf] %vm957, %v951
        %975 = vst [vmem:[%s237 + $0x6c] sm:$0xff] %v952
        %976 = vst.msk [vmem:[%s237 + $0x74] sm:$0xf] %vm957, %v953
        %977 = vst [vmem:[%s237 + $0x78] sm:$0xff] %v954
        %978 = vst.msk [vmem:[%s237 + $0x80] sm:$0xf] %vm957, %v955
        %s979 = sand.u32 %s138, 1
        %s980 = scalar_lea.sflag [#allocation4], %s979
        %s981 = sand.u32 %s138, 1
        %s982 = smul.addr %s981, 132
        %s983 = scalar_lea.vmem [#allocation5], %s982
        // Predicated region
        $region45: #{tpu_custom_call.1} parent=39 // pred_check
          %p984 = pneg %p148
        $region46: #{tpu_custom_call.1} parent=39 // pred_check_branch
          %986 = sbr.rel (%p984) target = $region48
        $region47: #{tpu_custom_call.1} parent=39 // pred_region
          %s987 = smul.u32 11, %s20
          %989 = vsyncadd %s980, 0
          %s990 = smul.addr %s987, 3
          %s991 = smul.addr %s990, 4
          %s992 = scalar_lea.hbm %s5, %s991
          %s993 = sshll.u32 %s983, 4
          %s994 = int_to_ptr.vmem [resolvable:$true] %s993
          %s995 = sshll.u32 %s992, 4
          %s996 = int_to_ptr.hbm [resolvable:$true] %s995
          %1001 = dma.vmem_to_hbm [thread:$0]  %s994, 2112, %s996, %s980, 192, 192, 12
        $region48: #{tpu_custom_call.1} parent=39 // pred_fallthru
          _
      $region40: #{tpu_custom_call.1} parent=5 // pred_fallthru
        _
      %p1002 = scmp.le.s32.totalorder 2, %s15
      // Predicated region
      $region49: #{tpu_custom_call.1} parent=5 // pred_check
        %p1003 = pneg %p1002
      $region50: #{tpu_custom_call.1} parent=5 // pred_check_branch
        %1005 = sbr.rel (%p1003) target = $region52
      $region51: #{tpu_custom_call.1} parent=5 // pred_region
        %s1006 = ssub.s32 %s15, 2
        // Predicated region
        $region53: #{tpu_custom_call.1} parent=51 // pred_check
          %p1007 = pneg %p154
        $region54: #{tpu_custom_call.1} parent=51 // pred_check_branch
          %1009 = sbr.rel (%p1007) target = $region56
        $region55: #{tpu_custom_call.1} parent=51 // pred_region
          %s1010 = sand.u32 %s139, 1
          %s1011 = scalar_lea.sflag [#allocation4], %s1010
          %s1012 = sand.u32 %s139, 1
          %s1013 = smul.addr %s1012, 132
          %s1014 = scalar_lea.vmem [#allocation5], %s1013
          %1016 = dma.done %s1011, 2112
        $region56: #{tpu_custom_call.1} parent=51 // pred_fallthru
          _
      $region52: #{tpu_custom_call.1} parent=5 // pred_fallthru
        _
    $region6: #{tpu_custom_call.1} parent=1 // loop_footer
      %s19 = sadd.s32 1, %s15
    $region7: #{tpu_custom_call.1} parent=1 // loop_footer_branch
      %14 = sbr.rel target = $region3
    $region8: #{tpu_custom_call.1} parent=1 // loop_exit
      _
    %1017 = vsyncpa [#allocation3], 1
    %s1018 = scalar_lea.sflag [#allocation3], 1
    %1019 = vsyncpa %s1018, 1
    %1020 = vsyncpa [#allocation4], 1
    %s1021 = scalar_lea.sflag [#allocation4], 1
    %1022 = vsyncpa %s1021, 1

</llo_original>
